<compile_context>
chip_gen: v7x
topology: tpu7x:2x2x1
jax: 0.10.0
libtpu: 0.0.40
codegen_flags: <defaults>
</compile_context>

<pallas_src>
import functools

import jax
import jax.numpy as jnp
from jax.experimental import pallas as pl
from jax.experimental.pallas import tpu as pltpu


def _cdiv(a: int, b: int) -> int:
    return -(-a // b)


def _round_up(a: int, b: int) -> int:
    return _cdiv(a, b) * b


def _pixel_to_priority_kernel(x_ref, o_ref, acc_ref, *,
                              th, num_kh, h, inv_hw, needs_row_mask):
    # Grid = (batch tile, core split, h tile); the last axis is the reduction.
    kh = pl.program_id(2)

    @pl.when(kh == 0)
    def _():
        acc_ref[...] = jnp.zeros_like(acc_ref)

    # Hot path: tanh in the input dtype (EUP), upcast, fold rows (sublanes)
    # into a lane-parallel f32 partial with full-vreg VPU adds.
    t = jnp.tanh(x_ref[...]).astype(jnp.float32)           # (tb, th, W)
    if needs_row_mask:
        # Zero rows past the true H (ragged last block, or a fully-OOB block
        # whose index_map was clamped).  Exact because tanh(0) = 0.
        row0 = (pl.program_id(1) * num_kh + kh) * th
        rows = jax.lax.broadcasted_iota(jnp.int32, (1, th, 1), 1) + row0
        t = jnp.where(rows < h, t, 0.0)
    acc_ref[...] += jnp.sum(t, axis=1)                      # (tb, W)

    @pl.when(kh == pl.num_programs(2) - 1)
    def _():
        # Epilogue only: cross-lane reduce + mean scale + lane-sparse store.
        total = jnp.sum(acc_ref[...], axis=-1, keepdims=True)   # (tb, 1)
        o_ref[...] = (total * inv_hw)[None].astype(o_ref.dtype)


def _tpu_defaults():
    """(per-step block byte budget, spatial core split) per TPU generation."""
    block_bytes, n_split = 4 * 1024 * 1024, 1
    try:
        kind = (jax.devices()[0].device_kind or "").lower()
    except Exception:
        kind = ""
    if ("v6" in kind) or ("v7" in kind) or ("7x" in kind):
        # Bigger blocks amortize the ~0.35us/step overhead; 2 x 8 MiB
        # double-buffered stays well under the 32 MiB scoped-VMEM default.
        block_bytes = 8 * 1024 * 1024
    if ("v7" in kind) or ("7x" in kind):
        n_split = 2        # two TensorCores per chip: split the reduction
    return block_bytes, n_split


def pixel_to_priority(x: jax.Array, *, block_bytes: int | None = None,
                      n_split: int | None = None) -> jax.Array:
    """x: (B, 1, H, W)  ->  (B, 1), mean over (h, w) of tanh(x)."""
    assert x.ndim == 4 and x.shape[1] == 1, "expected NCHW input with C == 1"
    b, _, h, w = x.shape
    hw = h * w
    itemsize = jnp.dtype(x.dtype).itemsize

    dflt_bytes, dflt_split = _tpu_defaults()
    if block_bytes is None:
        block_bytes = dflt_bytes
    if n_split is None:
        n_split = dflt_split

    # dtype-aware sublane granularity: 8 rows/vreg f32, 16 bf16, 32 int8/fp8.
    sub = max(8, 32 // itemsize)
    # Per-row footprint; lane dim is padded to 128 by the layout.
    row_bytes = _round_up(w, 128) * itemsize

    # Batch tile: keep the whole batch resident unless a minimal-height block
    # would blow the budget; then tile B (8-aligned for the output BlockSpec).
    if b * sub * row_bytes <= block_bytes:
        tb = b
    else:
        tb = max(8, (block_bytes // (sub * row_bytes)) // 8 * 8)
        tb = min(tb, _round_up(b, 8))
    num_b = _cdiv(b, tb)

    # Rows (H) per step: as many `sub`-row groups as fit the per-step budget.
    th = max(sub, (block_bytes // max(1, tb * row_bytes)) // sub * sub)
    th = min(th, _round_up(h, sub))
    total_h_blocks = _cdiv(h, th)

    # Spatial core split (v7x megacore); no-op cost on single-TC chips.
    n_split = max(1, min(n_split, total_h_blocks))
    num_kh = _cdiv(total_h_blocks, n_split)

    needs_row_mask = (n_split * num_kh * th != h)
    inv_hw = 1.0 / float(hw)

    kernel = functools.partial(
        _pixel_to_priority_kernel,
        th=th, num_kh=num_kh, h=h, inv_hw=inv_hw, needs_row_mask=needs_row_mask)

    def in_map(bi, p, kh):
        hb = p * num_kh + kh
        # Clamp fully-out-of-range blocks (odd block count split across cores);
        # their contribution is zeroed by the in-kernel row mask.
        hb = jnp.minimum(hb, total_h_blocks - 1)
        return (bi, 0, hb, 0)

    partials = pl.pallas_call(
        kernel,
        out_shape=jax.ShapeDtypeStruct((n_split, b, 1), jnp.float32),
        grid_spec=pltpu.PrefetchScalarGridSpec(
            num_scalar_prefetch=0,
            grid=(num_b, n_split, num_kh),
            in_specs=[pl.BlockSpec((tb, None, th, w), in_map)],
            out_specs=pl.BlockSpec((1, tb, 1), lambda bi, p, kh: (p, bi, 0)),
            scratch_shapes=[pltpu.VMEM((tb, w), jnp.float32)],
        ),
        compiler_params=pltpu.CompilerParams(
            dimension_semantics=("parallel", "parallel", "arbitrary"),
        ),
        cost_estimate=pl.CostEstimate(
            flops=2 * b * hw,
            transcendentals=b * hw,
            bytes_accessed=b * hw * itemsize + n_split * b * 4,
        ),
    )(x)

    # Merge the (<= 2) per-core partial sums; tiny XLA op.
    out = partials.sum(axis=0) if n_split > 1 else partials[0]
    return out.astype(x.dtype)


if __name__ == "__main__":
    key = jax.random.PRNGKey(0)

    # Small, aligned case (single block, no masking).
    B, C, H, W = 2, 1, 16, 16
    x = jax.random.normal(key, (B, C, H, W), dtype=jnp.float32)
    out = jax.block_until_ready(pixel_to_priority(x))
    ref = jnp.mean(jnp.tanh(x), axis=(2, 3))          # (B, 1)
    assert out.shape == (B, C), f"bad shape {out.shape}"
    assert jnp.allclose(out, ref, atol=1e-5, rtol=1e-5), "mismatch (aligned path)"

    # Ragged / multi-block / core-split path: H not a multiple of the row tile,
    # W not a multiple of 128, tiny forced block budget, forced 2-way split.
    x2 = jax.random.normal(jax.random.PRNGKey(1), (3, 1, 50, 96), dtype=jnp.float32)
    out2 = jax.block_until_ready(
        pixel_to_priority(x2, block_bytes=16 * 1024, n_split=2))
    ref2 = jnp.mean(jnp.tanh(x2), axis=(2, 3))
    assert out2.shape == (3, 1)
    assert jnp.allclose(out2, ref2, atol=1e-5, rtol=1e-5), "mismatch (ragged/split path)"

    # bf16 input exercises the dtype-aware (16-row) sublane rounding.
    x3 = jax.random.normal(jax.random.PRNGKey(2), (2, 1, 40, 64), dtype=jnp.bfloat16)
    out3 = jax.block_until_ready(pixel_to_priority(x3, block_bytes=16 * 1024))
    ref3 = jnp.mean(jnp.tanh(x3.astype(jnp.float32)), axis=(2, 3))
    assert jnp.allclose(out3.astype(jnp.float32), ref3, atol=2e-2, rtol=2e-2), "mismatch (bf16)"

    print("KERNEL_OK")
</pallas_src>

<mosaic_0001>
module attributes {stable_mosaic.version = 11 : i64} {
  func.func @_pixel_to_priority_kernel(%arg0: i32, %arg1: i32, %arg2: i32, %arg3: memref<2x1x16x16xf32, #tpu.memory_space<vmem>>, %arg4: memref<1x2x1xf32, #tpu.memory_space<vmem>>, %arg5: memref<2x16xf32, #tpu.memory_space<vmem>>) attributes {dimension_semantics = [#tpu.dimension_semantics<parallel>, #tpu.dimension_semantics<parallel>, #tpu.dimension_semantics<arbitrary>], iteration_bounds = array<i64: 1, 1, 1>, scalar_prefetch = 0 : i64, scratch_operands = 1 : i64, tpu.core_type = #tpu.core_type<tc>, window_params = [{transform_indices = @transform_0, window_bounds = array<i64: 2, 1, 16, 16>}, {transform_indices = @transform_1, window_bounds = array<i64: 1, 2, 1>}]} {
    %c0_i32 = arith.constant 0 : i32
    %0 = arith.cmpi eq, %arg2, %c0_i32 : i32
    %1 = arith.extui %0 : i1 to i32
    %c0_i32_0 = arith.constant 0 : i32
    %2 = arith.cmpi ne, %1, %c0_i32_0 : i32
    scf.if %2 {
      %cst_10 = arith.constant 0.000000e+00 : f32
      %13 = vector.broadcast %cst_10 : f32 to vector<2x16xf32>
      %c0_11 = arith.constant 0 : index
      %c0_12 = arith.constant 0 : index
      %14 = vector.load %arg5[%c0_11, %c0_12] : memref<2x16xf32, #tpu.memory_space<vmem>>, vector<2x16xf32>
      tpu.vector_store %arg5[%c0_11, %c0_12], %13 {strides = array<i32>} : memref<2x16xf32, #tpu.memory_space<vmem>>, vector<2x16xf32>,
    } else {
    }
    %c0 = arith.constant 0 : index
    %c0_1 = arith.constant 0 : index
    %c0_2 = arith.constant 0 : index
    %c0_3 = arith.constant 0 : index
    %3 = vector.load %arg3[%c0, %c0_1, %c0_2, %c0_3] : memref<2x1x16x16xf32, #tpu.memory_space<vmem>>, vector<2x1x16x16xf32>
    %4 = vector.shape_cast %3 : vector<2x1x16x16xf32> to vector<2x16x16xf32>
    %5 = math.tanh %4 : vector<2x16x16xf32>
    %c0_4 = arith.constant 0 : index
    %c0_5 = arith.constant 0 : index
    %6 = vector.load %arg5[%c0_4, %c0_5] : memref<2x16xf32, #tpu.memory_space<vmem>>, vector<2x16xf32>
    %cst = arith.constant dense<0.000000e+00> : vector<2x16xf32>
    %7 = vector.multi_reduction <add>, %5, %cst [1] : vector<2x16x16xf32> to vector<2x16xf32>
    %8 = arith.addf %6, %7 : vector<2x16xf32>
    %c0_6 = arith.constant 0 : index
    %c0_7 = arith.constant 0 : index
    %9 = vector.load %arg5[%c0_6, %c0_7] : memref<2x16xf32, #tpu.memory_space<vmem>>, vector<2x16xf32>
    tpu.vector_store %arg5[%c0_6, %c0_7], %8 {strides = array<i32>} : memref<2x16xf32, #tpu.memory_space<vmem>>, vector<2x16xf32>,
    %c0_i32_8 = arith.constant 0 : i32
    %10 = arith.cmpi eq, %arg2, %c0_i32_8 : i32
    %11 = arith.extui %10 : i1 to i32
    %c0_i32_9 = arith.constant 0 : i32
    %12 = arith.cmpi ne, %11, %c0_i32_9 : i32
    scf.if %12 {
      %c0_10 = arith.constant 0 : index
      %c0_11 = arith.constant 0 : index
      %13 = vector.load %arg5[%c0_10, %c0_11] : memref<2x16xf32, #tpu.memory_space<vmem>>, vector<2x16xf32>
      %cst_12 = arith.constant dense<0.000000e+00> : vector<2xf32>
      %14 = vector.multi_reduction <add>, %13, %cst_12 [1] : vector<2x16xf32> to vector<2xf32>
      %15 = vector.shape_cast %14 : vector<2xf32> to vector<2x1xf32>
      %cst_13 = arith.constant 3.906250e-03 : f32
      %16 = vector.broadcast %cst_13 : f32 to vector<2x1xf32>
      %17 = arith.mulf %15, %16 : vector<2x1xf32>
      %18 = vector.shape_cast %17 : vector<2x1xf32> to vector<1x2x1xf32>
      %c0_14 = arith.constant 0 : index
      %c0_15 = arith.constant 0 : index
      %c0_16 = arith.constant 0 : index
      %19 = vector.load %arg4[%c0_14, %c0_15, %c0_16] : memref<1x2x1xf32, #tpu.memory_space<vmem>>, vector<1x2x1xf32>
      tpu.vector_store %arg4[%c0_14, %c0_15, %c0_16], %18 {strides = array<i32>} : memref<1x2x1xf32, #tpu.memory_space<vmem>>, vector<1x2x1xf32>,
    } else {
    }
    return
  }
  func.func @transform_0(%arg0: i32, %arg1: i32, %arg2: i32) -> (i32, i32, i32, i32) {
    %c1_i32 = arith.constant 1 : i32
    %0 = arith.muli %arg1, %c1_i32 : i32
    %1 = arith.addi %0, %arg2 : i32
    %c0_i32 = arith.constant 0 : i32
    %2 = arith.minsi %1, %c0_i32 : i32
    %c0_i32_0 = arith.constant 0 : i32
    %c0_i32_1 = arith.constant 0 : i32
    %c0_i32_2 = arith.constant 0 : i32
    return %arg0, %c0_i32_0, %2, %c0_i32_1 : i32, i32, i32, i32
  }
  func.func @transform_1(%arg0: i32, %arg1: i32, %arg2: i32) -> (i32, i32, i32) {
    %c0_i32 = arith.constant 0 : i32
    %c0_i32_0 = arith.constant 0 : i32
    return %arg1, %arg0, %c0_i32 : i32, i32, i32
  }
}

</mosaic_0001>

<llo_original>
// kernel: tpu_custom_call.1
$region0: #{tpu_custom_call.1}
  #allocation0 [shape = 'u32[]', space=smem, size = 0x4, offset = 0x4, fixed_abs, tag = 'smem constant byte address 0x4 - core index']
  #allocation1 [shape = 'u32[144,128]{1,0:T(1,128)}', space=vmem, size = 0x12000, scoped, tag = 'internal scratch']
  #allocation2 [shape = 'f32[2,16]{1,0:T(2,128)}', space=vmem, size = 0x400, scoped, tag = 'scratch operand']
  %s0 = inlined_call_operand.hbm [shape: f32[2,1,16,16], index: 0, kind: input, shape index: {}]
  %s1 = inlined_call_operand.vmem [shape: f32[1,2,1], index: 1, kind: output, shape index: {}]
  %s2 = sld [smem:[#allocation0]]
  $region26: #{tpu_custom_call.1} parent=0
    _
  %s4 = ssub.s32 1, %s2
  %s5 = scalar_select 0, %s4, %s2
  $region1: #{tpu_custom_call.1} parent=0
    #allocation3 [shape = 'u8[16384]{0}', space=vmem, size = 0x4000, scoped, tag = 'input window, operand 0, single buffered']
    #allocation4 [shape = 's32[1]{0}', space=sflag, size = 0x4, scoped, tag = 'scoped memory for tpu_custom_call.1']
    %6 = vsyncpa [#allocation4], 0
    // Predicated region
    $region2: #{tpu_custom_call.1} parent=1 // pred_check
      _
    $region3: #{tpu_custom_call.1} parent=1 // pred_check_branch
      %8 = sbr.rel (0) target = $region5
    $region4: #{tpu_custom_call.1} parent=1 // pred_region
      %s9 = sadd.s32 0, 0
      %p10 = scmp.lt.s32.totalorder %s9, 0
      %s11 = scalar_select %p10, %s9, 0
      %s12 = smul.u32 2, %s11
      %s14 = ssub.s32 512, 512
      %15 = vsyncadd [#allocation4], %s14
      %s16 = smul.addr %s12, 128
      %s17 = scalar_lea.hbm %s0, %s16
      %s18 = sshll.u32 [#allocation3], 4
      %s19 = int_to_ptr.vmem [resolvable:$true] %s18
      %24 = dma.hbm_to_vmem [thread:$0]  %s17, 512, %s19, [#allocation4], 128, 128, 8
    $region5: #{tpu_custom_call.1} parent=1 // pred_fallthru
      _
    // Predicated region
    $region6: #{tpu_custom_call.1} parent=1 // pred_check
      _
    $region7: #{tpu_custom_call.1} parent=1 // pred_check_branch
      %26 = sbr.rel (0) target = $region9
    $region8: #{tpu_custom_call.1} parent=1 // pred_region
      %27 = dma.done [#allocation4], 512
    $region9: #{tpu_custom_call.1} parent=1 // pred_fallthru
      _
    %s28 = sadd.s32 0, 0
    %p29 = scmp.lt.s32.totalorder %s28, 0
    %s30 = scalar_select %p29, %s28, 0
    %s31 = smul.u32 2, %s30
    %p32 = scmp.eq.s32.totalorder 0, 0
    // Predicated region
    $region10: #{tpu_custom_call.1} parent=1 // pred_check
      %p33 = pneg %p32
    $region11: #{tpu_custom_call.1} parent=1 // pred_check_branch
      %35 = sbr.rel (%p33) target = $region13
    $region12: #{tpu_custom_call.1} parent=1 // pred_region
      %vm36 = vcmask 123904
      %37 = vst.msk [vmem:[#allocation2] sm:$0x3] %vm36, 0.0
    $region13: #{tpu_custom_call.1} parent=1 // pred_fallthru
      _
    %v38 = vld [vmem:[#allocation3] sm:$0xff]
    %v39 = vld [vmem:[#allocation3 + $0x8] sm:$0xff]
    %v40 = vld [vmem:[#allocation3 + $0x10] sm:$0xff]
    %v41 = vld [vmem:[#allocation3 + $0x18] sm:$0xff]
    %v42 = vtanh.pop %v38
    %v43 = vtanh.pop %v39
    %v44 = vtanh.pop %v40
    %v45 = vtanh.pop %v41
    %v46 = vld [vmem:[#allocation2] sm:$0x3]
    %vm47 = vcmask 130048
    %v48 = vsel %vm47, %v42, 0.0
    %v49 = vsel %vm47, %v43, 0.0
    %v50 = vadd.f32 %v48, %v49
    %v51 = vrot.slane %v50, 4
    %v52 = vadd.f32 %v50, %v51
    %v53 = vrot.slane %v52, 2
    %v54 = vadd.f32 %v52, %v53
    %v55 = vrot.slane %v54, 1
    %v56 = vadd.f32 %v54, %v55
    %v57 = vsel %vm47, %v44, 0.0
    %v58 = vsel %vm47, %v45, 0.0
    %v59 = vadd.f32 %v57, %v58
    %v60 = vrot.slane %v59, 4
    %v61 = vadd.f32 %v59, %v60
    %v62 = vrot.slane %v61, 2
    %v63 = vadd.f32 %v61, %v62
    %v64 = vrot.slane %v63, 1
    %v65 = vadd.f32 %v63, %v64
    %vm68 = vcmask 1041409
    %v69 = vsel %vm68, %v65, %v56
    %v71 = vadd.f32 %v46, %v69
    %vm72 = vcmask 123904
    %73 = vst.msk [vmem:[#allocation2] sm:$0x3] %vm72, %v71
    // Predicated region
    $region14: #{tpu_custom_call.1} parent=1 // pred_check
      %p74 = pneg %p32
    $region15: #{tpu_custom_call.1} parent=1 // pred_check_branch
      %76 = sbr.rel (%p74) target = $region17
    $region16: #{tpu_custom_call.1} parent=1 // pred_region
      %v77 = vld [vmem:[#allocation2] sm:$0x3]
      %v78 = vsel %vm72, %v77, 0.0
      %79 = vadd.xlane.f32.xlu0 %v78
      %v80 = vpop.xlane.xlu0 %79
      %v81 = vmul.f32 %v80, 0.00390625
      %vm82 = vcmask 1024
      %83 = vst.msk [vmem:[%s1] sm:$0x3] %vm82, %v81
    $region17: #{tpu_custom_call.1} parent=1 // pred_fallthru
      _
    // Predicated region
    $region18: #{tpu_custom_call.1} parent=1 // pred_check
      _
    $region19: #{tpu_custom_call.1} parent=1 // pred_check_branch
      %85 = sbr.rel (0) target = $region21
    $region20: #{tpu_custom_call.1} parent=1 // pred_region
      _
    $region21: #{tpu_custom_call.1} parent=1 // pred_fallthru
      _
    // Predicated region
    $region22: #{tpu_custom_call.1} parent=1 // pred_check
      _
    $region23: #{tpu_custom_call.1} parent=1 // pred_check_branch
      %87 = sbr.rel (0) target = $region25
    $region24: #{tpu_custom_call.1} parent=1 // pred_region
      _
    $region25: #{tpu_custom_call.1} parent=1 // pred_fallthru
      _
    %88 = vsyncpa [#allocation4], 1

</llo_original>
